<compile_context>
chip_gen: v6e
topology: v6e:2x2x1
jax: 0.10.0
libtpu: 0.0.40
codegen_flags: <defaults>
</compile_context>

<pallas_src>
import jax
import jax.numpy as jnp
from jax.experimental import pallas as pl
from jax.experimental.pallas import tpu as pltpu

_LANE = 128
_SUBLANE = 8


def _round_up(x: int, m: int) -> int:
    return ((x + m - 1) // m) * m


def _cv_forward_kernel(fmt_ref, w_ref, idx_ref, b_ref, out_ref):
    """Single grid step; whole (padded) problem resident in VMEM.

    fmt_ref : VMEM f32[T_pad, S_pad]  zero-padded forward_matrix, pre-transposed
    w_ref   : VMEM f32[8,     T_pad]  w in row 0, rows 1..7 zero (MXU-friendly M=8)
    idx_ref : VMEM i32[1,     B_pad]  gather indices, tail padded with 0
    b_ref   : SMEM f32[1]             bias
    out_ref : VMEM f32[8,     B_pad]  y_pred in row 0 (lane-dense, single store)
    """
    # u[0, s] = sum_t w[t] * forward_matrix[s, t]  -- MXU matvec; the T-reduction
    # happens inside the systolic array (no VPU multiply / XLU lane reduce).
    u = jnp.dot(w_ref[...], fmt_ref[...],
                preferred_element_type=jnp.float32,
                precision=jax.lax.Precision.HIGHEST)            # (8, S_pad)

    # Row gather as a one-hot matmul: P[s, b] = (s == idx[b]); y = u @ P.
    # Exact in f32 (each output lane sums a single nonzero product).
    # TODO(synk): indices >= sample_size match no row and silently yield y = b;
    # add pl.debug_check under enable_debug_checks if stricter behavior is needed.
    s_pad = fmt_ref.shape[1]
    b_pad = idx_ref.shape[1]
    row_ids = jax.lax.broadcasted_iota(jnp.int32, (s_pad, b_pad), 0)
    p = jnp.where(row_ids == idx_ref[...], jnp.float32(1.0), jnp.float32(0.0))
    y = jnp.dot(u, p,
                preferred_element_type=jnp.float32,
                precision=jax.lax.Precision.HIGHEST)            # (8, B_pad)

    out_ref[...] = y + b_ref[0]


def init_cv_state(forward_matrix, w, b):
    """One-time padding / layout of the constant operands.

    Hoisted out of the per-minibatch path: fm and w do not change between
    minibatch calls, so re-padding them per call (HBM write + read + extra
    dispatches) is avoided entirely.
    """
    S, T = forward_matrix.shape
    S_pad = _round_up(S, _LANE)   # lane dim of fm^T / contraction dim of gather dot
    T_pad = _round_up(T, _LANE)   # contraction dim of the matvec

    fm_t = jnp.zeros((T_pad, S_pad), jnp.float32)
    fm_t = fm_t.at[:T, :S].set(jnp.transpose(forward_matrix.astype(jnp.float32)))
    w_blk = jnp.zeros((_SUBLANE, T_pad), jnp.float32).at[0, :T].set(
        w.astype(jnp.float32))
    b_arr = jnp.reshape(b, (1,)).astype(jnp.float32)
    return fm_t, w_blk, b_arr


@jax.jit
def gaussian_cv_minibatch(fm_t, w_blk, b_arr, indices):
    """y_pred[i] = w . forward_matrix[indices[i]] + b   (== PyTorch minibatch())."""
    batch = indices.shape[0]
    b_pad = _round_up(batch, _LANE)
    idx_row = jnp.zeros((1, b_pad), jnp.int32).at[0, :batch].set(
        indices.astype(jnp.int32))

    t_pad, s_pad = fm_t.shape
    # VMEM need: inputs + one-hot intermediate + output (bytes).
    need = 4 * (fm_t.size + w_blk.size + idx_row.size
                + s_pad * b_pad + _SUBLANE * b_pad)
    compiler_params = None
    if need > 12 * 2**20:
        # Generation-aware cap (~60% of physical VMEM: ~38 MiB on v7x,
        # ~76 MiB on v5e/v6e) instead of a hard-coded limit.
        try:
            cap = pltpu.get_tpu_info().vmem_capacity_bytes
        except Exception:  # pragma: no cover - conservative fallback
            cap = 64 * 2**20
        compiler_params = pltpu.CompilerParams(
            vmem_limit_bytes=int(min(int(0.6 * cap), 2 * need)))
    # TODO(synk): for forward_matrix larger than ~0.5x device VMEM switch to a
    # batch-blocked PrefetchScalarGridSpec gather (indices as scalar prefetch
    # driving the row index_map, >=128 gathered rows per grid step, bf16 fm
    # tiles, and a leading "parallel" grid axis so v7x's two TensorCores both
    # get work) instead of this single resident tile.

    out = pl.pallas_call(
        _cv_forward_kernel,
        out_shape=jax.ShapeDtypeStruct((_SUBLANE, b_pad), jnp.float32),
        in_specs=[
            pl.BlockSpec(memory_space=pltpu.MemorySpace.VMEM),   # forward_matrix^T
            pl.BlockSpec(memory_space=pltpu.MemorySpace.VMEM),   # w block
            pl.BlockSpec(memory_space=pltpu.MemorySpace.VMEM),   # indices
            pl.BlockSpec(memory_space=pltpu.MemorySpace.SMEM),   # b
        ],
        out_specs=pl.BlockSpec(memory_space=pltpu.MemorySpace.VMEM),
        compiler_params=compiler_params,
    )(fm_t, w_blk, idx_row, b_arr)
    return out[0, :batch]


def build_module_state(key, sample_size=64, dim=4, train_pct=0.95, sigma_sq=0.1):
    """Deterministically build the state GaussianControlVariate.__init__ creates."""
    kx, ky, kw = jax.random.split(key, 3)
    X = jax.random.normal(kx, (sample_size, dim), dtype=jnp.float32)
    Y = jax.random.normal(ky, (sample_size,), dtype=jnp.float32)

    # Gaussian-kernel gram matrix with median-heuristic length scale (plain-JAX glue).
    sq = jnp.sum(X * X, axis=1)
    d2 = sq[:, None] + sq[None, :] - 2.0 * (X @ X.T)
    d2 = jnp.maximum(d2, 0.0)
    ell2 = jnp.median(d2) + 1e-6
    K = jnp.exp(-d2 / (2.0 * ell2))

    gram_matrix = K + sigma_sq                       # gram + sigma_sq
    train_size = int(sample_size * train_pct)
    forward_matrix = gram_matrix[:, :train_size]     # (sample_size, train_size)

    # Parameters: __init__ sets w = zeros(train_size), b = Y.mean().
    # Use small deterministic random w instead of zeros so the dot-product path
    # is actually exercised.
    w = 0.1 * jax.random.normal(kw, (train_size,), dtype=jnp.float32)
    b = jnp.mean(Y)
    return X, Y, forward_matrix, w, b, train_size


if __name__ == "__main__":
    key = jax.random.PRNGKey(0)
    X, Y, forward_matrix, w, b, train_size = build_module_state(key)

    # One-time (init) padding / layout of the constant operands.
    fm_t, w_blk, b_arr = init_cv_state(forward_matrix, w, b)

    batch = 8
    indices = (jnp.arange(batch, dtype=jnp.int32) * 3) % train_size  # deterministic
    x_batch = X[indices]  # unused by forward(), kept for interface fidelity

    y_pred = gaussian_cv_minibatch(fm_t, w_blk, b_arr, indices)
    y_pred = jax.block_until_ready(y_pred)

    # Pure-JAX reference of the PyTorch forward/minibatch semantics.
    y_ref = jnp.sum(forward_matrix[indices] * w[None, :], axis=1) + b

    assert y_pred.shape == (batch,)
    assert jnp.allclose(y_pred, y_ref, atol=1e-5, rtol=1e-5), (y_pred, y_ref)
    print("KERNEL_OK")
</pallas_src>

<mosaic_0001>
module attributes {stable_mosaic.version = 11 : i64} {
  func.func @_cv_forward_kernel(%arg0: memref<128x128xf32, #tpu.memory_space<vmem>>, %arg1: memref<8x128xf32, #tpu.memory_space<vmem>>, %arg2: memref<1x128xi32, #tpu.memory_space<vmem>>, %arg3: memref<1xf32, #tpu.memory_space<smem>>, %arg4: memref<8x128xf32, #tpu.memory_space<vmem>>) attributes {dimension_semantics = [], scalar_prefetch = 0 : i64, scratch_operands = 0 : i64, tpu.core_type = #tpu.core_type<tc>} {
    %c0 = arith.constant 0 : index
    %c0_0 = arith.constant 0 : index
    %0 = vector.load %arg1[%c0, %c0_0] : memref<8x128xf32, #tpu.memory_space<vmem>>, vector<8x128xf32>
    %c0_1 = arith.constant 0 : index
    %c0_2 = arith.constant 0 : index
    %1 = vector.load %arg0[%c0_1, %c0_2] : memref<128x128xf32, #tpu.memory_space<vmem>>, vector<128x128xf32>
    %cst = arith.constant dense<0.000000e+00> : vector<8x128xf32>
    %2 = tpu.matmul %0, %1, %cst {dimension_numbers = #tpu.dot_dimension_numbers<[1], [0], [0], [1], [0, 0, 1, 1], [], []>, precision = #tpu.contract_precision<fp32>} : vector<8x128xf32>, vector<128x128xf32>, vector<8x128xf32> -> vector<8x128xf32>
    %3 = tpu.iota {dimensions = array<i32: 0>} : vector<128x128xi32>
    %c0_3 = arith.constant 0 : index
    %c0_4 = arith.constant 0 : index
    %4 = vector.load %arg2[%c0_3, %c0_4] : memref<1x128xi32, #tpu.memory_space<vmem>>, vector<1x128xi32>
    %5 = vector.broadcast %4 : vector<1x128xi32> to vector<128x128xi32>
    %6 = arith.cmpi eq, %3, %5 : vector<128x128xi32>
    %cst_5 = arith.constant 1.000000e+00 : f32
    %cst_6 = arith.constant 0.000000e+00 : f32
    %7 = vector.broadcast %cst_5 : f32 to vector<128x128xf32>
    %8 = vector.broadcast %cst_6 : f32 to vector<128x128xf32>
    %9 = arith.select %6, %7, %8 : vector<128x128xi1>, vector<128x128xf32>
    %cst_7 = arith.constant dense<0.000000e+00> : vector<8x128xf32>
    %10 = tpu.matmul %2, %9, %cst_7 {dimension_numbers = #tpu.dot_dimension_numbers<[1], [0], [0], [1], [0, 0, 1, 1], [], []>, precision = #tpu.contract_precision<fp32>} : vector<8x128xf32>, vector<128x128xf32>, vector<8x128xf32> -> vector<8x128xf32>
    %c0_8 = arith.constant 0 : index
    %11 = memref.load %arg3[%c0_8] : memref<1xf32, #tpu.memory_space<smem>>
    %12 = vector.broadcast %11 : f32 to vector<8x128xf32>
    %13 = arith.addf %10, %12 : vector<8x128xf32>
    %c0_9 = arith.constant 0 : index
    %c0_10 = arith.constant 0 : index
    %14 = vector.load %arg4[%c0_9, %c0_10] : memref<8x128xf32, #tpu.memory_space<vmem>>, vector<8x128xf32>
    tpu.vector_store %arg4[%c0_9, %c0_10], %13 {strides = array<i32>} : memref<8x128xf32, #tpu.memory_space<vmem>>, vector<8x128xf32>,
    return
  }
}

</mosaic_0001>

<llo_original>
// kernel: gaussian_cv_minibatch.1
$region0: #{gaussian_cv_minibatch.1}
  #allocation0 [shape = 'u32[]', space=smem, size = 0x4, offset = 0x4, fixed_abs, tag = 'smem constant byte address 0x4 - core index']
  #allocation1 [shape = 'u32[144,128]{1,0:T(1,128)}', space=vmem, size = 0x12000, scoped, tag = 'internal scratch']
  #allocation2 [shape = 'f32[1]{0:T(128)S(6)}', space=smem, size = 0x200, scoped, tag = 'scoped memory for gaussian_cv_minibatch.1']
  %s0 = inlined_call_operand.hbm [shape: f32[128,128], index: 0, kind: input, shape index: {}]
  %s1 = inlined_call_operand.vmem [shape: f32[8,128], index: 1, kind: input, shape index: {}]
  %s2 = inlined_call_operand.vmem [shape: s32[1,128], index: 2, kind: input, shape index: {}]
  %s3 = inlined_call_operand.<no memory space> [shape: f32[1], index: 3, kind: input, shape index: {}]
  %s4 = inlined_call_operand.vmem [shape: f32[8,128], index: 4, kind: output, shape index: {}]
  %s5 = sld [smem:[#allocation0]]
  $region30: #{gaussian_cv_minibatch.1} parent=0
    _
  %s7 = ssub.s32 1, %s5
  %s8 = scalar_select 0, %s7, %s5
  %9 = sst [smem:[#allocation2]] %s3
  $region1: #{gaussian_cv_minibatch.1} parent=0
    #allocation3 [shape = 'u8[65536]{0}', space=vmem, size = 0x10000, scoped, tag = 'input window, operand 0, single buffered']
    #allocation4 [shape = 's32[1]{0}', space=sflag, size = 0x4, scoped, tag = 'scoped memory for gaussian_cv_minibatch.1']
    %10 = vsyncpa [#allocation4], 0
    // Predicated region
    $region2: #{gaussian_cv_minibatch.1} parent=1 // pred_check
      _
    $region3: #{gaussian_cv_minibatch.1} parent=1 // pred_check_branch
      %12 = sbr.rel (0) target = $region5
    $region4: #{gaussian_cv_minibatch.1} parent=1 // pred_region
      %s14 = ssub.s32 2048, 2048
      %15 = vsyncadd [#allocation4], %s14
      %s16 = sshll.u32 [#allocation3], 4
      %s17 = int_to_ptr.vmem [resolvable:$true] %s16
      %22 = dma.hbm_to_vmem [thread:$0]  %s0, 2048, %s17, [#allocation4], 128, 128, 8
    $region5: #{gaussian_cv_minibatch.1} parent=1 // pred_fallthru
      _
    // Predicated region
    $region6: #{gaussian_cv_minibatch.1} parent=1 // pred_check
      _
    $region7: #{gaussian_cv_minibatch.1} parent=1 // pred_check_branch
      %24 = sbr.rel (0) target = $region9
    $region8: #{gaussian_cv_minibatch.1} parent=1 // pred_region
      _
    $region9: #{gaussian_cv_minibatch.1} parent=1 // pred_fallthru
      _
    // Predicated region
    $region10: #{gaussian_cv_minibatch.1} parent=1 // pred_check
      _
    $region11: #{gaussian_cv_minibatch.1} parent=1 // pred_check_branch
      %26 = sbr.rel (0) target = $region13
    $region12: #{gaussian_cv_minibatch.1} parent=1 // pred_region
      _
    $region13: #{gaussian_cv_minibatch.1} parent=1 // pred_fallthru
      _
    // Predicated region
    $region14: #{gaussian_cv_minibatch.1} parent=1 // pred_check
      _
    $region15: #{gaussian_cv_minibatch.1} parent=1 // pred_check_branch
      %28 = sbr.rel (0) target = $region17
    $region16: #{gaussian_cv_minibatch.1} parent=1 // pred_region
      _
    $region17: #{gaussian_cv_minibatch.1} parent=1 // pred_fallthru
      _
    // Predicated region
    $region18: #{gaussian_cv_minibatch.1} parent=1 // pred_check
      _
    $region19: #{gaussian_cv_minibatch.1} parent=1 // pred_check_branch
      %30 = sbr.rel (0) target = $region21
    $region20: #{gaussian_cv_minibatch.1} parent=1 // pred_region
      %31 = dma.done [#allocation4], 2048
    $region21: #{gaussian_cv_minibatch.1} parent=1 // pred_fallthru
      _
    %v32 = vld [vmem:[%s1] sm:$0xff]
    %v33 = vld [vmem:[#allocation3] sm:$0xff]
    %v34 = vld [vmem:[#allocation3 + $0x8] sm:$0xff]
    %v35 = vld [vmem:[#allocation3 + $0x10] sm:$0xff]
    %v36 = vld [vmem:[#allocation3 + $0x18] sm:$0xff]
    %v37 = vld [vmem:[#allocation3 + $0x20] sm:$0xff]
    %v38 = vld [vmem:[#allocation3 + $0x28] sm:$0xff]
    %v39 = vld [vmem:[#allocation3 + $0x30] sm:$0xff]
    %v40 = vld [vmem:[#allocation3 + $0x38] sm:$0xff]
    %v41 = vld [vmem:[#allocation3 + $0x40] sm:$0xff]
    %v42 = vld [vmem:[#allocation3 + $0x48] sm:$0xff]
    %v43 = vld [vmem:[#allocation3 + $0x50] sm:$0xff]
    %v44 = vld [vmem:[#allocation3 + $0x58] sm:$0xff]
    %v45 = vld [vmem:[#allocation3 + $0x60] sm:$0xff]
    %v46 = vld [vmem:[#allocation3 + $0x68] sm:$0xff]
    %v47 = vld [vmem:[#allocation3 + $0x70] sm:$0xff]
    %v48 = vld [vmem:[#allocation3 + $0x78] sm:$0xff]
    %49 = vmatprep.subr.mxu0 0.0
    %v50 = vand.u32 %v48, 4294901760
    %51 = vmatpush1.msra.mxu0 %v50
    %52 = vmatprep.subr.mxu0 0.0
    %v53 = vand.u32 %v47, 4294901760
    %54 = vmatpush1.msra.mxu0 %v53
    %55 = vmatprep.subr.mxu0 0.0
    %v56 = vand.u32 %v46, 4294901760
    %57 = vmatpush1.msra.mxu0 %v56
    %58 = vmatprep.subr.mxu0 0.0
    %v59 = vand.u32 %v45, 4294901760
    %60 = vmatpush1.msra.mxu0 %v59
    %61 = vmatprep.subr.mxu0 0.0
    %v62 = vand.u32 %v44, 4294901760
    %63 = vmatpush1.msra.mxu0 %v62
    %64 = vmatprep.subr.mxu0 0.0
    %v65 = vand.u32 %v43, 4294901760
    %66 = vmatpush1.msra.mxu0 %v65
    %67 = vmatprep.subr.mxu0 0.0
    %v68 = vand.u32 %v42, 4294901760
    %69 = vmatpush1.msra.mxu0 %v68
    %70 = vmatprep.subr.mxu0 0.0
    %v71 = vand.u32 %v41, 4294901760
    %72 = vmatpush1.msra.mxu0 %v71
    %73 = vmatprep.subr.mxu0 0.0
    %v74 = vand.u32 %v40, 4294901760
    %75 = vmatpush1.msra.mxu0 %v74
    %76 = vmatprep.subr.mxu0 0.0
    %v77 = vand.u32 %v39, 4294901760
    %78 = vmatpush1.msra.mxu0 %v77
    %79 = vmatprep.subr.mxu0 0.0
    %v80 = vand.u32 %v38, 4294901760
    %81 = vmatpush1.msra.mxu0 %v80
    %82 = vmatprep.subr.mxu0 0.0
    %v83 = vand.u32 %v37, 4294901760
    %84 = vmatpush1.msra.mxu0 %v83
    %85 = vmatprep.subr.mxu0 0.0
    %v86 = vand.u32 %v36, 4294901760
    %87 = vmatpush1.msra.mxu0 %v86
    %88 = vmatprep.subr.mxu0 0.0
    %v89 = vand.u32 %v35, 4294901760
    %90 = vmatpush1.msra.mxu0 %v89
    %91 = vmatprep.subr.mxu0 0.0
    %v92 = vand.u32 %v34, 4294901760
    %93 = vmatpush1.msra.mxu0 %v92
    %94 = vmatprep.subr.mxu0 0.0
    %v95 = vand.u32 %v33, 4294901760
    %96 = vmatpush1.msra.mxu0 %v95
    %97 = vmatprep.subr.mxu0 0.0
    %98 = vmatpush2.msra.mxu0 0.0
    %99 = vmatprep.subr.mxu0 0.0
    %100 = vmatpush2.msra.mxu0 0.0
    %101 = vmatprep.subr.mxu0 0.0
    %102 = vmatpush2.msra.mxu0 0.0
    %103 = vmatprep.subr.mxu0 0.0
    %104 = vmatpush2.msra.mxu0 0.0
    %105 = vmatprep.subr.mxu0 0.0
    %106 = vmatpush2.msra.mxu0 0.0
    %107 = vmatprep.subr.mxu0 0.0
    %108 = vmatpush2.msra.mxu0 0.0
    %109 = vmatprep.subr.mxu0 0.0
    %110 = vmatpush2.msra.mxu0 0.0
    %111 = vmatprep.subr.mxu0 0.0
    %112 = vmatpush2.msra.mxu0 0.0
    %113 = vmatprep.subr.mxu0 0.0
    %114 = vmatpush2.msra.mxu0 0.0
    %115 = vmatprep.subr.mxu0 0.0
    %116 = vmatpush2.msra.mxu0 0.0
    %117 = vmatprep.subr.mxu0 0.0
    %118 = vmatpush2.msra.mxu0 0.0
    %119 = vmatprep.subr.mxu0 0.0
    %120 = vmatpush2.msra.mxu0 0.0
    %121 = vmatprep.subr.mxu0 0.0
    %122 = vmatpush2.msra.mxu0 0.0
    %123 = vmatprep.subr.mxu0 0.0
    %124 = vmatpush2.msra.mxu0 0.0
    %125 = vmatprep.subr.mxu0 0.0
    %126 = vmatpush2.msra.mxu0 0.0
    %127 = vmatprep.subr.mxu0 0.0
    %128 = vmatpush2.msra.mxu0 0.0
    %129 = vmatprep.mubr.f32.mxu0 0.0
    %v130 = vand.u32 %v32, 4294901760
    %v131 = vsub.f32 %v32, %v130
    %v132 = vand.u32 %v131, 4294901760
    %v133 = vsub.f32 %v131, %v132
    %v134 = vand.u32 %v133, 4294901760
    %135 = vmatmul.mubr.f32.gmra.mxu0 %v134
    %v136 = vpop.f32.mrf.mxu0
    %v137 = vadd.f32 0.0, %v136
    %v138 = vpop.f32.mrf.mxu0
    %139 = vdwg.mxu0
    %140 = vmatprep.subr.mxu0 0.0
    %v141 = vand.u32 %v48, 4294901760
    %v142 = vsub.f32 %v48, %v141
    %v143 = vand.u32 %v142, 4294901760
    %v144 = vsub.f32 %v142, %v143
    %v145 = vand.u32 %v144, 4294901760
    %146 = vmatpush1.msra.mxu0 %v145
    %147 = vmatprep.subr.mxu0 0.0
    %v148 = vand.u32 %v47, 4294901760
    %v149 = vsub.f32 %v47, %v148
    %v150 = vand.u32 %v149, 4294901760
    %v151 = vsub.f32 %v149, %v150
    %v152 = vand.u32 %v151, 4294901760
    %153 = vmatpush1.msra.mxu0 %v152
    %154 = vmatprep.subr.mxu0 0.0
    %v155 = vand.u32 %v46, 4294901760
    %v156 = vsub.f32 %v46, %v155
    %v157 = vand.u32 %v156, 4294901760
    %v158 = vsub.f32 %v156, %v157
    %v159 = vand.u32 %v158, 4294901760
    %160 = vmatpush1.msra.mxu0 %v159
    %161 = vmatprep.subr.mxu0 0.0
    %v162 = vand.u32 %v45, 4294901760
    %v163 = vsub.f32 %v45, %v162
    %v164 = vand.u32 %v163, 4294901760
    %v165 = vsub.f32 %v163, %v164
    %v166 = vand.u32 %v165, 4294901760
    %167 = vmatpush1.msra.mxu0 %v166
    %168 = vmatprep.subr.mxu0 0.0
    %v169 = vand.u32 %v44, 4294901760
    %v170 = vsub.f32 %v44, %v169
    %v171 = vand.u32 %v170, 4294901760
    %v172 = vsub.f32 %v170, %v171
    %v173 = vand.u32 %v172, 4294901760
    %174 = vmatpush1.msra.mxu0 %v173
    %175 = vmatprep.subr.mxu0 0.0
    %v176 = vand.u32 %v43, 4294901760
    %v177 = vsub.f32 %v43, %v176
    %v178 = vand.u32 %v177, 4294901760
    %v179 = vsub.f32 %v177, %v178
    %v180 = vand.u32 %v179, 4294901760
    %181 = vmatpush1.msra.mxu0 %v180
    %182 = vmatprep.subr.mxu0 0.0
    %v183 = vand.u32 %v42, 4294901760
    %v184 = vsub.f32 %v42, %v183
    %v185 = vand.u32 %v184, 4294901760
    %v186 = vsub.f32 %v184, %v185
    %v187 = vand.u32 %v186, 4294901760
    %188 = vmatpush1.msra.mxu0 %v187
    %189 = vmatprep.subr.mxu0 0.0
    %v190 = vand.u32 %v41, 4294901760
    %v191 = vsub.f32 %v41, %v190
    %v192 = vand.u32 %v191, 4294901760
    %v193 = vsub.f32 %v191, %v192
    %v194 = vand.u32 %v193, 4294901760
    %195 = vmatpush1.msra.mxu0 %v194
    %196 = vmatprep.subr.mxu0 0.0
    %v197 = vand.u32 %v40, 4294901760
    %v198 = vsub.f32 %v40, %v197
    %v199 = vand.u32 %v198, 4294901760
    %v200 = vsub.f32 %v198, %v199
    %v201 = vand.u32 %v200, 4294901760
    %202 = vmatpush1.msra.mxu0 %v201
    %203 = vmatprep.subr.mxu0 0.0
    %v204 = vand.u32 %v39, 4294901760
    %v205 = vsub.f32 %v39, %v204
    %v206 = vand.u32 %v205, 4294901760
    %v207 = vsub.f32 %v205, %v206
    %v208 = vand.u32 %v207, 4294901760
    %209 = vmatpush1.msra.mxu0 %v208
    %210 = vmatprep.subr.mxu0 0.0
    %v211 = vand.u32 %v38, 4294901760
    %v212 = vsub.f32 %v38, %v211
    %v213 = vand.u32 %v212, 4294901760
    %v214 = vsub.f32 %v212, %v213
    %v215 = vand.u32 %v214, 4294901760
    %216 = vmatpush1.msra.mxu0 %v215
    %217 = vmatprep.subr.mxu0 0.0
    %v218 = vand.u32 %v37, 4294901760
    %v219 = vsub.f32 %v37, %v218
    %v220 = vand.u32 %v219, 4294901760
    %v221 = vsub.f32 %v219, %v220
    %v222 = vand.u32 %v221, 4294901760
    %223 = vmatpush1.msra.mxu0 %v222
    %224 = vmatprep.subr.mxu0 0.0
    %v225 = vand.u32 %v36, 4294901760
    %v226 = vsub.f32 %v36, %v225
    %v227 = vand.u32 %v226, 4294901760
    %v228 = vsub.f32 %v226, %v227
    %v229 = vand.u32 %v228, 4294901760
    %230 = vmatpush1.msra.mxu0 %v229
    %231 = vmatprep.subr.mxu0 0.0
    %v232 = vand.u32 %v35, 4294901760
    %v233 = vsub.f32 %v35, %v232
    %v234 = vand.u32 %v233, 4294901760
    %v235 = vsub.f32 %v233, %v234
    %v236 = vand.u32 %v235, 4294901760
    %237 = vmatpush1.msra.mxu0 %v236
    %238 = vmatprep.subr.mxu0 0.0
    %v239 = vand.u32 %v34, 4294901760
    %v240 = vsub.f32 %v34, %v239
    %v241 = vand.u32 %v240, 4294901760
    %v242 = vsub.f32 %v240, %v241
    %v243 = vand.u32 %v242, 4294901760
    %244 = vmatpush1.msra.mxu0 %v243
    %245 = vmatprep.subr.mxu0 0.0
    %v246 = vand.u32 %v33, 4294901760
    %v247 = vsub.f32 %v33, %v246
    %v248 = vand.u32 %v247, 4294901760
    %v249 = vsub.f32 %v247, %v248
    %v250 = vand.u32 %v249, 4294901760
    %251 = vmatpush1.msra.mxu0 %v250
    %252 = vmatprep.subr.mxu0 0.0
    %253 = vmatpush2.msra.mxu0 0.0
    %254 = vmatprep.subr.mxu0 0.0
    %255 = vmatpush2.msra.mxu0 0.0
    %256 = vmatprep.subr.mxu0 0.0
    %257 = vmatpush2.msra.mxu0 0.0
    %258 = vmatprep.subr.mxu0 0.0
    %259 = vmatpush2.msra.mxu0 0.0
    %260 = vmatprep.subr.mxu0 0.0
    %261 = vmatpush2.msra.mxu0 0.0
    %262 = vmatprep.subr.mxu0 0.0
    %263 = vmatpush2.msra.mxu0 0.0
    %264 = vmatprep.subr.mxu0 0.0
    %265 = vmatpush2.msra.mxu0 0.0
    %266 = vmatprep.subr.mxu0 0.0
    %267 = vmatpush2.msra.mxu0 0.0
    %268 = vmatprep.subr.mxu0 0.0
    %269 = vmatpush2.msra.mxu0 0.0
    %270 = vmatprep.subr.mxu0 0.0
    %271 = vmatpush2.msra.mxu0 0.0
    %272 = vmatprep.subr.mxu0 0.0
    %273 = vmatpush2.msra.mxu0 0.0
    %274 = vmatprep.subr.mxu0 0.0
    %275 = vmatpush2.msra.mxu0 0.0
    %276 = vmatprep.subr.mxu0 0.0
    %277 = vmatpush2.msra.mxu0 0.0
    %278 = vmatprep.subr.mxu0 0.0
    %279 = vmatpush2.msra.mxu0 0.0
    %280 = vmatprep.subr.mxu0 0.0
    %281 = vmatpush2.msra.mxu0 0.0
    %282 = vmatprep.subr.mxu0 0.0
    %283 = vmatpush2.msra.mxu0 0.0
    %284 = vmatprep.mubr.f32.mxu0 0.0
    %v285 = vand.u32 %v32, 4294901760
    %286 = vmatmul.mubr.f32.gmra.mxu0 %v285
    %v287 = vpop.f32.mrf.mxu0
    %v288 = vadd.f32 %v137, %v287
    %v289 = vpop.f32.mrf.mxu0
    %290 = vdwg.mxu0
    %291 = vmatprep.subr.mxu0 0.0
    %v292 = vand.u32 %v48, 4294901760
    %v293 = vsub.f32 %v48, %v292
    %294 = vmatpush1.msra.mxu0 %v293
    %295 = vmatprep.subr.mxu0 0.0
    %v296 = vand.u32 %v47, 4294901760
    %v297 = vsub.f32 %v47, %v296
    %298 = vmatpush1.msra.mxu0 %v297
    %299 = vmatprep.subr.mxu0 0.0
    %v300 = vand.u32 %v46, 4294901760
    %v301 = vsub.f32 %v46, %v300
    %302 = vmatpush1.msra.mxu0 %v301
    %303 = vmatprep.subr.mxu0 0.0
    %v304 = vand.u32 %v45, 4294901760
    %v305 = vsub.f32 %v45, %v304
    %306 = vmatpush1.msra.mxu0 %v305
    %307 = vmatprep.subr.mxu0 0.0
    %v308 = vand.u32 %v44, 4294901760
    %v309 = vsub.f32 %v44, %v308
    %310 = vmatpush1.msra.mxu0 %v309
    %311 = vmatprep.subr.mxu0 0.0
    %v312 = vand.u32 %v43, 4294901760
    %v313 = vsub.f32 %v43, %v312
    %314 = vmatpush1.msra.mxu0 %v313
    %315 = vmatprep.subr.mxu0 0.0
    %v316 = vand.u32 %v42, 4294901760
    %v317 = vsub.f32 %v42, %v316
    %318 = vmatpush1.msra.mxu0 %v317
    %319 = vmatprep.subr.mxu0 0.0
    %v320 = vand.u32 %v41, 4294901760
    %v321 = vsub.f32 %v41, %v320
    %322 = vmatpush1.msra.mxu0 %v321
    %323 = vmatprep.subr.mxu0 0.0
    %v324 = vand.u32 %v40, 4294901760
    %v325 = vsub.f32 %v40, %v324
    %326 = vmatpush1.msra.mxu0 %v325
    %327 = vmatprep.subr.mxu0 0.0
    %v328 = vand.u32 %v39, 4294901760
    %v329 = vsub.f32 %v39, %v328
    %330 = vmatpush1.msra.mxu0 %v329
    %331 = vmatprep.subr.mxu0 0.0
    %v332 = vand.u32 %v38, 4294901760
    %v333 = vsub.f32 %v38, %v332
    %334 = vmatpush1.msra.mxu0 %v333
    %335 = vmatprep.subr.mxu0 0.0
    %v336 = vand.u32 %v37, 4294901760
    %v337 = vsub.f32 %v37, %v336
    %338 = vmatpush1.msra.mxu0 %v337
    %339 = vmatprep.subr.mxu0 0.0
    %v340 = vand.u32 %v36, 4294901760
    %v341 = vsub.f32 %v36, %v340
    %342 = vmatpush1.msra.mxu0 %v341
    %343 = vmatprep.subr.mxu0 0.0
    %v344 = vand.u32 %v35, 4294901760
    %v345 = vsub.f32 %v35, %v344
    %346 = vmatpush1.msra.mxu0 %v345
    %347 = vmatprep.subr.mxu0 0.0
    %v348 = vand.u32 %v34, 4294901760
    %v349 = vsub.f32 %v34, %v348
    %350 = vmatpush1.msra.mxu0 %v349
    %351 = vmatprep.subr.mxu0 0.0
    %v352 = vand.u32 %v33, 4294901760
    %v353 = vsub.f32 %v33, %v352
    %354 = vmatpush1.msra.mxu0 %v353
    %355 = vmatprep.subr.mxu0 0.0
    %356 = vmatpush2.msra.mxu0 0.0
    %357 = vmatprep.subr.mxu0 0.0
    %358 = vmatpush2.msra.mxu0 0.0
    %359 = vmatprep.subr.mxu0 0.0
    %360 = vmatpush2.msra.mxu0 0.0
    %361 = vmatprep.subr.mxu0 0.0
    %362 = vmatpush2.msra.mxu0 0.0
    %363 = vmatprep.subr.mxu0 0.0
    %364 = vmatpush2.msra.mxu0 0.0
    %365 = vmatprep.subr.mxu0 0.0
    %366 = vmatpush2.msra.mxu0 0.0
    %367 = vmatprep.subr.mxu0 0.0
    %368 = vmatpush2.msra.mxu0 0.0
    %369 = vmatprep.subr.mxu0 0.0
    %370 = vmatpush2.msra.mxu0 0.0
    %371 = vmatprep.subr.mxu0 0.0
    %372 = vmatpush2.msra.mxu0 0.0
    %373 = vmatprep.subr.mxu0 0.0
    %374 = vmatpush2.msra.mxu0 0.0
    %375 = vmatprep.subr.mxu0 0.0
    %376 = vmatpush2.msra.mxu0 0.0
    %377 = vmatprep.subr.mxu0 0.0
    %378 = vmatpush2.msra.mxu0 0.0
    %379 = vmatprep.subr.mxu0 0.0
    %380 = vmatpush2.msra.mxu0 0.0
    %381 = vmatprep.subr.mxu0 0.0
    %382 = vmatpush2.msra.mxu0 0.0
    %383 = vmatprep.subr.mxu0 0.0
    %384 = vmatpush2.msra.mxu0 0.0
    %385 = vmatprep.subr.mxu0 0.0
    %386 = vmatpush2.msra.mxu0 0.0
    %387 = vmatprep.mubr.f32.mxu0 0.0
    %v388 = vand.u32 %v32, 4294901760
    %v389 = vsub.f32 %v32, %v388
    %390 = vmatmul.mubr.f32.gmra.mxu0 %v389
    %v391 = vpop.f32.mrf.mxu0
    %v392 = vadd.f32 %v288, %v391
    %v393 = vpop.f32.mrf.mxu0
    %394 = vdwg.mxu0
    %395 = vmatprep.subr.mxu0 0.0
    %v396 = vand.u32 %v48, 4294901760
    %397 = vmatpush1.msra.mxu0 %v396
    %398 = vmatprep.subr.mxu0 0.0
    %v399 = vand.u32 %v47, 4294901760
    %400 = vmatpush1.msra.mxu0 %v399
    %401 = vmatprep.subr.mxu0 0.0
    %v402 = vand.u32 %v46, 4294901760
    %403 = vmatpush1.msra.mxu0 %v402
    %404 = vmatprep.subr.mxu0 0.0
    %v405 = vand.u32 %v45, 4294901760
    %406 = vmatpush1.msra.mxu0 %v405
    %407 = vmatprep.subr.mxu0 0.0
    %v408 = vand.u32 %v44, 4294901760
    %409 = vmatpush1.msra.mxu0 %v408
    %410 = vmatprep.subr.mxu0 0.0
    %v411 = vand.u32 %v43, 4294901760
    %412 = vmatpush1.msra.mxu0 %v411
    %413 = vmatprep.subr.mxu0 0.0
    %v414 = vand.u32 %v42, 4294901760
    %415 = vmatpush1.msra.mxu0 %v414
    %416 = vmatprep.subr.mxu0 0.0
    %v417 = vand.u32 %v41, 4294901760
    %418 = vmatpush1.msra.mxu0 %v417
    %419 = vmatprep.subr.mxu0 0.0
    %v420 = vand.u32 %v40, 4294901760
    %421 = vmatpush1.msra.mxu0 %v420
    %422 = vmatprep.subr.mxu0 0.0
    %v423 = vand.u32 %v39, 4294901760
    %424 = vmatpush1.msra.mxu0 %v423
    %425 = vmatprep.subr.mxu0 0.0
    %v426 = vand.u32 %v38, 4294901760
    %427 = vmatpush1.msra.mxu0 %v426
    %428 = vmatprep.subr.mxu0 0.0
    %v429 = vand.u32 %v37, 4294901760
    %430 = vmatpush1.msra.mxu0 %v429
    %431 = vmatprep.subr.mxu0 0.0
    %v432 = vand.u32 %v36, 4294901760
    %433 = vmatpush1.msra.mxu0 %v432
    %434 = vmatprep.subr.mxu0 0.0
    %v435 = vand.u32 %v35, 4294901760
    %436 = vmatpush1.msra.mxu0 %v435
    %437 = vmatprep.subr.mxu0 0.0
    %v438 = vand.u32 %v34, 4294901760
    %439 = vmatpush1.msra.mxu0 %v438
    %440 = vmatprep.subr.mxu0 0.0
    %v441 = vand.u32 %v33, 4294901760
    %442 = vmatpush1.msra.mxu0 %v441
    %443 = vmatprep.subr.mxu0 0.0
    %444 = vmatpush2.msra.mxu0 0.0
    %445 = vmatprep.subr.mxu0 0.0
    %446 = vmatpush2.msra.mxu0 0.0
    %447 = vmatprep.subr.mxu0 0.0
    %448 = vmatpush2.msra.mxu0 0.0
    %449 = vmatprep.subr.mxu0 0.0
    %450 = vmatpush2.msra.mxu0 0.0
    %451 = vmatprep.subr.mxu0 0.0
    %452 = vmatpush2.msra.mxu0 0.0
    %453 = vmatprep.subr.mxu0 0.0
    %454 = vmatpush2.msra.mxu0 0.0
    %455 = vmatprep.subr.mxu0 0.0
    %456 = vmatpush2.msra.mxu0 0.0
    %457 = vmatprep.subr.mxu0 0.0
    %458 = vmatpush2.msra.mxu0 0.0
    %459 = vmatprep.subr.mxu0 0.0
    %460 = vmatpush2.msra.mxu0 0.0
    %461 = vmatprep.subr.mxu0 0.0
    %462 = vmatpush2.msra.mxu0 0.0
    %463 = vmatprep.subr.mxu0 0.0
    %464 = vmatpush2.msra.mxu0 0.0
    %465 = vmatprep.subr.mxu0 0.0
    %466 = vmatpush2.msra.mxu0 0.0
    %467 = vmatprep.subr.mxu0 0.0
    %468 = vmatpush2.msra.mxu0 0.0
    %469 = vmatprep.subr.mxu0 0.0
    %470 = vmatpush2.msra.mxu0 0.0
    %471 = vmatprep.subr.mxu0 0.0
    %472 = vmatpush2.msra.mxu0 0.0
    %473 = vmatprep.subr.mxu0 0.0
    %474 = vmatpush2.msra.mxu0 0.0
    %475 = vmatprep.mubr.f32.mxu0 0.0
    %v476 = vand.u32 %v32, 4294901760
    %v477 = vsub.f32 %v32, %v476
    %v478 = vand.u32 %v477, 4294901760
    %479 = vmatmul.mubr.f32.gmra.mxu0 %v478
    %v480 = vpop.f32.mrf.mxu0
    %v481 = vadd.f32 %v392, %v480
    %v482 = vpop.f32.mrf.mxu0
    %483 = vdwg.mxu0
    %484 = vmatprep.subr.mxu0 0.0
    %v485 = vand.u32 %v48, 4294901760
    %v486 = vsub.f32 %v48, %v485
    %v487 = vand.u32 %v486, 4294901760
    %488 = vmatpush1.msra.mxu0 %v487
    %489 = vmatprep.subr.mxu0 0.0
    %v490 = vand.u32 %v47, 4294901760
    %v491 = vsub.f32 %v47, %v490
    %v492 = vand.u32 %v491, 4294901760
    %493 = vmatpush1.msra.mxu0 %v492
    %494 = vmatprep.subr.mxu0 0.0
    %v495 = vand.u32 %v46, 4294901760
    %v496 = vsub.f32 %v46, %v495
    %v497 = vand.u32 %v496, 4294901760
    %498 = vmatpush1.msra.mxu0 %v497
    %499 = vmatprep.subr.mxu0 0.0
    %v500 = vand.u32 %v45, 4294901760
    %v501 = vsub.f32 %v45, %v500
    %v502 = vand.u32 %v501, 4294901760
    %503 = vmatpush1.msra.mxu0 %v502
    %504 = vmatprep.subr.mxu0 0.0
    %v505 = vand.u32 %v44, 4294901760
    %v506 = vsub.f32 %v44, %v505
    %v507 = vand.u32 %v506, 4294901760
    %508 = vmatpush1.msra.mxu0 %v507
    %509 = vmatprep.subr.mxu0 0.0
    %v510 = vand.u32 %v43, 4294901760
    %v511 = vsub.f32 %v43, %v510
    %v512 = vand.u32 %v511, 4294901760
    %513 = vmatpush1.msra.mxu0 %v512
    %514 = vmatprep.subr.mxu0 0.0
    %v515 = vand.u32 %v42, 4294901760
    %v516 = vsub.f32 %v42, %v515
    %v517 = vand.u32 %v516, 4294901760
    %518 = vmatpush1.msra.mxu0 %v517
    %519 = vmatprep.subr.mxu0 0.0
    %v520 = vand.u32 %v41, 4294901760
    %v521 = vsub.f32 %v41, %v520
    %v522 = vand.u32 %v521, 4294901760
    %523 = vmatpush1.msra.mxu0 %v522
    %524 = vmatprep.subr.mxu0 0.0
    %v525 = vand.u32 %v40, 4294901760
    %v526 = vsub.f32 %v40, %v525
    %v527 = vand.u32 %v526, 4294901760
    %528 = vmatpush1.msra.mxu0 %v527
    %529 = vmatprep.subr.mxu0 0.0
    %v530 = vand.u32 %v39, 4294901760
    %v531 = vsub.f32 %v39, %v530
    %v532 = vand.u32 %v531, 4294901760
    %533 = vmatpush1.msra.mxu0 %v532
    %534 = vmatprep.subr.mxu0 0.0
    %v535 = vand.u32 %v38, 4294901760
    %v536 = vsub.f32 %v38, %v535
    %v537 = vand.u32 %v536, 4294901760
    %538 = vmatpush1.msra.mxu0 %v537
    %539 = vmatprep.subr.mxu0 0.0
    %v540 = vand.u32 %v37, 4294901760
    %v541 = vsub.f32 %v37, %v540
    %v542 = vand.u32 %v541, 4294901760
    %543 = vmatpush1.msra.mxu0 %v542
    %544 = vmatprep.subr.mxu0 0.0
    %v545 = vand.u32 %v36, 4294901760
    %v546 = vsub.f32 %v36, %v545
    %v547 = vand.u32 %v546, 4294901760
    %548 = vmatpush1.msra.mxu0 %v547
    %549 = vmatprep.subr.mxu0 0.0
    %v550 = vand.u32 %v35, 4294901760
    %v551 = vsub.f32 %v35, %v550
    %v552 = vand.u32 %v551, 4294901760
    %553 = vmatpush1.msra.mxu0 %v552
    %554 = vmatprep.subr.mxu0 0.0
    %v555 = vand.u32 %v34, 4294901760
    %v556 = vsub.f32 %v34, %v555
    %v557 = vand.u32 %v556, 4294901760
    %558 = vmatpush1.msra.mxu0 %v557
    %559 = vmatprep.subr.mxu0 0.0
    %v560 = vand.u32 %v33, 4294901760
    %v561 = vsub.f32 %v33, %v560
    %v562 = vand.u32 %v561, 4294901760
    %563 = vmatpush1.msra.mxu0 %v562
    %564 = vmatprep.subr.mxu0 0.0
    %565 = vmatpush2.msra.mxu0 0.0
    %566 = vmatprep.subr.mxu0 0.0
    %567 = vmatpush2.msra.mxu0 0.0
    %568 = vmatprep.subr.mxu0 0.0
    %569 = vmatpush2.msra.mxu0 0.0
    %570 = vmatprep.subr.mxu0 0.0
    %571 = vmatpush2.msra.mxu0 0.0
    %572 = vmatprep.subr.mxu0 0.0
    %573 = vmatpush2.msra.mxu0 0.0
    %574 = vmatprep.subr.mxu0 0.0
    %575 = vmatpush2.msra.mxu0 0.0
    %576 = vmatprep.subr.mxu0 0.0
    %577 = vmatpush2.msra.mxu0 0.0
    %578 = vmatprep.subr.mxu0 0.0
    %579 = vmatpush2.msra.mxu0 0.0
    %580 = vmatprep.subr.mxu0 0.0
    %581 = vmatpush2.msra.mxu0 0.0
    %582 = vmatprep.subr.mxu0 0.0
    %583 = vmatpush2.msra.mxu0 0.0
    %584 = vmatprep.subr.mxu0 0.0
    %585 = vmatpush2.msra.mxu0 0.0
    %586 = vmatprep.subr.mxu0 0.0
    %587 = vmatpush2.msra.mxu0 0.0
    %588 = vmatprep.subr.mxu0 0.0
    %589 = vmatpush2.msra.mxu0 0.0
    %590 = vmatprep.subr.mxu0 0.0
    %591 = vmatpush2.msra.mxu0 0.0
    %592 = vmatprep.subr.mxu0 0.0
    %593 = vmatpush2.msra.mxu0 0.0
    %594 = vmatprep.subr.mxu0 0.0
    %595 = vmatpush2.msra.mxu0 0.0
    %596 = vmatprep.mubr.f32.mxu0 0.0
    %v597 = vand.u32 %v32, 4294901760
    %598 = vmatmul.mubr.f32.gmra.mxu0 %v597
    %v599 = vpop.f32.mrf.mxu0
    %v600 = vadd.f32 %v481, %v599
    %v601 = vpop.f32.mrf.mxu0
    %602 = vdwg.mxu0
    %603 = vmatprep.subr.mxu0 0.0
    %v604 = vand.u32 %v48, 4294901760
    %605 = vmatpush1.msra.mxu0 %v604
    %606 = vmatprep.subr.mxu0 0.0
    %v607 = vand.u32 %v47, 4294901760
    %608 = vmatpush1.msra.mxu0 %v607
    %609 = vmatprep.subr.mxu0 0.0
    %v610 = vand.u32 %v46, 4294901760
    %611 = vmatpush1.msra.mxu0 %v610
    %612 = vmatprep.subr.mxu0 0.0
    %v613 = vand.u32 %v45, 4294901760
    %614 = vmatpush1.msra.mxu0 %v613
    %615 = vmatprep.subr.mxu0 0.0
    %v616 = vand.u32 %v44, 4294901760
    %617 = vmatpush1.msra.mxu0 %v616
    %618 = vmatprep.subr.mxu0 0.0
    %v619 = vand.u32 %v43, 4294901760
    %620 = vmatpush1.msra.mxu0 %v619
    %621 = vmatprep.subr.mxu0 0.0
    %v622 = vand.u32 %v42, 4294901760
    %623 = vmatpush1.msra.mxu0 %v622
    %624 = vmatprep.subr.mxu0 0.0
    %v625 = vand.u32 %v41, 4294901760
    %626 = vmatpush1.msra.mxu0 %v625
    %627 = vmatprep.subr.mxu0 0.0
    %v628 = vand.u32 %v40, 4294901760
    %629 = vmatpush1.msra.mxu0 %v628
    %630 = vmatprep.subr.mxu0 0.0
    %v631 = vand.u32 %v39, 4294901760
    %632 = vmatpush1.msra.mxu0 %v631
    %633 = vmatprep.subr.mxu0 0.0
    %v634 = vand.u32 %v38, 4294901760
    %635 = vmatpush1.msra.mxu0 %v634
    %636 = vmatprep.subr.mxu0 0.0
    %v637 = vand.u32 %v37, 4294901760
    %638 = vmatpush1.msra.mxu0 %v637
    %639 = vmatprep.subr.mxu0 0.0
    %v640 = vand.u32 %v36, 4294901760
    %641 = vmatpush1.msra.mxu0 %v640
    %642 = vmatprep.subr.mxu0 0.0
    %v643 = vand.u32 %v35, 4294901760
    %644 = vmatpush1.msra.mxu0 %v643
    %645 = vmatprep.subr.mxu0 0.0
    %v646 = vand.u32 %v34, 4294901760
    %647 = vmatpush1.msra.mxu0 %v646
    %648 = vmatprep.subr.mxu0 0.0
    %v649 = vand.u32 %v33, 4294901760
    %650 = vmatpush1.msra.mxu0 %v649
    %651 = vmatprep.subr.mxu0 0.0
    %652 = vmatpush2.msra.mxu0 0.0
    %653 = vmatprep.subr.mxu0 0.0
    %654 = vmatpush2.msra.mxu0 0.0
    %655 = vmatprep.subr.mxu0 0.0
    %656 = vmatpush2.msra.mxu0 0.0
    %657 = vmatprep.subr.mxu0 0.0
    %658 = vmatpush2.msra.mxu0 0.0
    %659 = vmatprep.subr.mxu0 0.0
    %660 = vmatpush2.msra.mxu0 0.0
    %661 = vmatprep.subr.mxu0 0.0
    %662 = vmatpush2.msra.mxu0 0.0
    %663 = vmatprep.subr.mxu0 0.0
    %664 = vmatpush2.msra.mxu0 0.0
    %665 = vmatprep.subr.mxu0 0.0
    %666 = vmatpush2.msra.mxu0 0.0
    %667 = vmatprep.subr.mxu0 0.0
    %668 = vmatpush2.msra.mxu0 0.0
    %669 = vmatprep.subr.mxu0 0.0
    %670 = vmatpush2.msra.mxu0 0.0
    %671 = vmatprep.subr.mxu0 0.0
    %672 = vmatpush2.msra.mxu0 0.0
    %673 = vmatprep.subr.mxu0 0.0
    %674 = vmatpush2.msra.mxu0 0.0
    %675 = vmatprep.subr.mxu0 0.0
    %676 = vmatpush2.msra.mxu0 0.0
    %677 = vmatprep.subr.mxu0 0.0
    %678 = vmatpush2.msra.mxu0 0.0
    %679 = vmatprep.subr.mxu0 0.0
    %680 = vmatpush2.msra.mxu0 0.0
    %681 = vmatprep.subr.mxu0 0.0
    %682 = vmatpush2.msra.mxu0 0.0
    %683 = vmatprep.mubr.f32.mxu0 0.0
    %v684 = vand.u32 %v32, 4294901760
    %685 = vmatmul.mubr.f32.gmra.mxu0 %v684
    %v686 = vpop.f32.mrf.mxu0
    %v687 = vadd.f32 %v600, %v686
    %v688 = vpop.f32.mrf.mxu0
    %689 = vdwg.mxu0
    %v690 = vlaneseq
    %v691 = vshrl.u32 %v690, 7
    %v692 = vadd.s32 %v691, 8
    %v693 = vadd.s32 %v691, 16
    %v694 = vadd.s32 %v691, 24
    %v695 = vadd.s32 %v691, 32
    %v696 = vadd.s32 %v691, 40
    %v697 = vadd.s32 %v691, 48
    %v698 = vadd.s32 %v691, 56
    %v699 = vadd.s32 %v691, 64
    %v700 = vadd.s32 %v691, 72
    %v701 = vadd.s32 %v691, 80
    %v702 = vadd.s32 %v691, 88
    %v703 = vadd.s32 %v691, 96
    %v704 = vadd.s32 %v691, 104
    %v705 = vadd.s32 %v691, 112
    %v706 = vadd.s32 %v691, 120
    %v707 = vld [vmem:[%s2] sm:$0x1]
    %v708 = vlaneseq
    %v709 = vshrl.u32 %v708, 7
    %v710 = vsub.s32 0, %v709
    %v711 = vrot.slane %v707, %v710
    %vm712 = vcmp.eq.s32.totalorder %v691, %v711
    %vm713 = vcmp.eq.s32.totalorder %v692, %v711
    %vm714 = vcmp.eq.s32.totalorder %v693, %v711
    %vm715 = vcmp.eq.s32.totalorder %v694, %v711
    %vm716 = vcmp.eq.s32.totalorder %v695, %v711
    %vm717 = vcmp.eq.s32.totalorder %v696, %v711
    %vm718 = vcmp.eq.s32.totalorder %v697, %v711
    %vm719 = vcmp.eq.s32.totalorder %v698, %v711
    %vm720 = vcmp.eq.s32.totalorder %v699, %v711
    %vm721 = vcmp.eq.s32.totalorder %v700, %v711
    %vm722 = vcmp.eq.s32.totalorder %v701, %v711
    %vm723 = vcmp.eq.s32.totalorder %v702, %v711
    %vm724 = vcmp.eq.s32.totalorder %v703, %v711
    %vm725 = vcmp.eq.s32.totalorder %v704, %v711
    %vm726 = vcmp.eq.s32.totalorder %v705, %v711
    %vm727 = vcmp.eq.s32.totalorder %v706, %v711
    %v728 = vsel %vm712, 1.0, 0.0
    %v729 = vsel %vm713, 1.0, 0.0
    %v730 = vsel %vm714, 1.0, 0.0
    %v731 = vsel %vm715, 1.0, 0.0
    %v732 = vsel %vm716, 1.0, 0.0
    %v733 = vsel %vm717, 1.0, 0.0
    %v734 = vsel %vm718, 1.0, 0.0
    %v735 = vsel %vm719, 1.0, 0.0
    %v736 = vsel %vm720, 1.0, 0.0
    %v737 = vsel %vm721, 1.0, 0.0
    %v738 = vsel %vm722, 1.0, 0.0
    %v739 = vsel %vm723, 1.0, 0.0
    %v740 = vsel %vm724, 1.0, 0.0
    %v741 = vsel %vm725, 1.0, 0.0
    %v742 = vsel %vm726, 1.0, 0.0
    %v743 = vsel %vm727, 1.0, 0.0
    %s744 = sld [smem:[#allocation2]]
    %v745 = vstv %s744
    %746 = vmatprep.subr.mxu0 0.0
    %747 = vmatpush1.msra.mxu0 %v743
    %748 = vmatprep.subr.mxu0 0.0
    %749 = vmatpush1.msra.mxu0 %v742
    %750 = vmatprep.subr.mxu0 0.0
    %751 = vmatpush1.msra.mxu0 %v741
    %752 = vmatprep.subr.mxu0 0.0
    %753 = vmatpush1.msra.mxu0 %v740
    %754 = vmatprep.subr.mxu0 0.0
    %755 = vmatpush1.msra.mxu0 %v739
    %756 = vmatprep.subr.mxu0 0.0
    %757 = vmatpush1.msra.mxu0 %v738
    %758 = vmatprep.subr.mxu0 0.0
    %759 = vmatpush1.msra.mxu0 %v737
    %760 = vmatprep.subr.mxu0 0.0
    %761 = vmatpush1.msra.mxu0 %v736
    %762 = vmatprep.subr.mxu0 0.0
    %763 = vmatpush1.msra.mxu0 %v735
    %764 = vmatprep.subr.mxu0 0.0
    %765 = vmatpush1.msra.mxu0 %v734
    %766 = vmatprep.subr.mxu0 0.0
    %767 = vmatpush1.msra.mxu0 %v733
    %768 = vmatprep.subr.mxu0 0.0
    %769 = vmatpush1.msra.mxu0 %v732
    %770 = vmatprep.subr.mxu0 0.0
    %771 = vmatpush1.msra.mxu0 %v731
    %772 = vmatprep.subr.mxu0 0.0
    %773 = vmatpush1.msra.mxu0 %v730
    %774 = vmatprep.subr.mxu0 0.0
    %775 = vmatpush1.msra.mxu0 %v729
    %776 = vmatprep.subr.mxu0 0.0
    %777 = vmatpush1.msra.mxu0 %v728
    %778 = vmatprep.subr.mxu0 0.0
    %779 = vmatpush2.msra.mxu0 0.0
    %780 = vmatprep.subr.mxu0 0.0
    %781 = vmatpush2.msra.mxu0 0.0
    %782 = vmatprep.subr.mxu0 0.0
    %783 = vmatpush2.msra.mxu0 0.0
    %784 = vmatprep.subr.mxu0 0.0
    %785 = vmatpush2.msra.mxu0 0.0
    %786 = vmatprep.subr.mxu0 0.0
    %787 = vmatpush2.msra.mxu0 0.0
    %788 = vmatprep.subr.mxu0 0.0
    %789 = vmatpush2.msra.mxu0 0.0
    %790 = vmatprep.subr.mxu0 0.0
    %791 = vmatpush2.msra.mxu0 0.0
    %792 = vmatprep.subr.mxu0 0.0
    %793 = vmatpush2.msra.mxu0 0.0
    %794 = vmatprep.subr.mxu0 0.0
    %795 = vmatpush2.msra.mxu0 0.0
    %796 = vmatprep.subr.mxu0 0.0
    %797 = vmatpush2.msra.mxu0 0.0
    %798 = vmatprep.subr.mxu0 0.0
    %799 = vmatpush2.msra.mxu0 0.0
    %800 = vmatprep.subr.mxu0 0.0
    %801 = vmatpush2.msra.mxu0 0.0
    %802 = vmatprep.subr.mxu0 0.0
    %803 = vmatpush2.msra.mxu0 0.0
    %804 = vmatprep.subr.mxu0 0.0
    %805 = vmatpush2.msra.mxu0 0.0
    %806 = vmatprep.subr.mxu0 0.0
    %807 = vmatpush2.msra.mxu0 0.0
    %808 = vmatprep.subr.mxu0 0.0
    %809 = vmatpush2.msra.mxu0 0.0
    %810 = vmatprep.mubr.f32.mxu0 0.0
    %v811 = vand.u32 %v687, 4294901760
    %v812 = vsub.f32 %v687, %v811
    %v813 = vand.u32 %v812, 4294901760
    %v814 = vsub.f32 %v812, %v813
    %v815 = vand.u32 %v814, 4294901760
    %816 = vmatmul.mubr.f32.gmra.mxu0 %v815
    %v817 = vpop.f32.mrf.mxu0
    %v818 = vadd.f32 %v745, %v817
    %v819 = vpop.f32.mrf.mxu0
    %820 = vdwg.mxu0
    %821 = vmatprep.subr.mxu0 0.0
    %v822 = vsub.f32 %v743, %v743
    %v823 = vand.u32 %v822, 4294901760
    %v824 = vsub.f32 %v822, %v823
    %v825 = vand.u32 %v824, 4294901760
    %826 = vmatpush1.msra.mxu0 %v825
    %827 = vmatprep.subr.mxu0 0.0
    %v828 = vsub.f32 %v742, %v742
    %v829 = vand.u32 %v828, 4294901760
    %v830 = vsub.f32 %v828, %v829
    %v831 = vand.u32 %v830, 4294901760
    %832 = vmatpush1.msra.mxu0 %v831
    %833 = vmatprep.subr.mxu0 0.0
    %v834 = vsub.f32 %v741, %v741
    %v835 = vand.u32 %v834, 4294901760
    %v836 = vsub.f32 %v834, %v835
    %v837 = vand.u32 %v836, 4294901760
    %838 = vmatpush1.msra.mxu0 %v837
    %839 = vmatprep.subr.mxu0 0.0
    %v840 = vsub.f32 %v740, %v740
    %v841 = vand.u32 %v840, 4294901760
    %v842 = vsub.f32 %v840, %v841
    %v843 = vand.u32 %v842, 4294901760
    %844 = vmatpush1.msra.mxu0 %v843
    %845 = vmatprep.subr.mxu0 0.0
    %v846 = vsub.f32 %v739, %v739
    %v847 = vand.u32 %v846, 4294901760
    %v848 = vsub.f32 %v846, %v847
    %v849 = vand.u32 %v848, 4294901760
    %850 = vmatpush1.msra.mxu0 %v849
    %851 = vmatprep.subr.mxu0 0.0
    %v852 = vsub.f32 %v738, %v738
    %v853 = vand.u32 %v852, 4294901760
    %v854 = vsub.f32 %v852, %v853
    %v855 = vand.u32 %v854, 4294901760
    %856 = vmatpush1.msra.mxu0 %v855
    %857 = vmatprep.subr.mxu0 0.0
    %v858 = vsub.f32 %v737, %v737
    %v859 = vand.u32 %v858, 4294901760
    %v860 = vsub.f32 %v858, %v859
    %v861 = vand.u32 %v860, 4294901760
    %862 = vmatpush1.msra.mxu0 %v861
    %863 = vmatprep.subr.mxu0 0.0
    %v864 = vsub.f32 %v736, %v736
    %v865 = vand.u32 %v864, 4294901760
    %v866 = vsub.f32 %v864, %v865
    %v867 = vand.u32 %v866, 4294901760
    %868 = vmatpush1.msra.mxu0 %v867
    %869 = vmatprep.subr.mxu0 0.0
    %v870 = vsub.f32 %v735, %v735
    %v871 = vand.u32 %v870, 4294901760
    %v872 = vsub.f32 %v870, %v871
    %v873 = vand.u32 %v872, 4294901760
    %874 = vmatpush1.msra.mxu0 %v873
    %875 = vmatprep.subr.mxu0 0.0
    %v876 = vsub.f32 %v734, %v734
    %v877 = vand.u32 %v876, 4294901760
    %v878 = vsub.f32 %v876, %v877
    %v879 = vand.u32 %v878, 4294901760
    %880 = vmatpush1.msra.mxu0 %v879
    %881 = vmatprep.subr.mxu0 0.0
    %v882 = vsub.f32 %v733, %v733
    %v883 = vand.u32 %v882, 4294901760
    %v884 = vsub.f32 %v882, %v883
    %v885 = vand.u32 %v884, 4294901760
    %886 = vmatpush1.msra.mxu0 %v885
    %887 = vmatprep.subr.mxu0 0.0
    %v888 = vsub.f32 %v732, %v732
    %v889 = vand.u32 %v888, 4294901760
    %v890 = vsub.f32 %v888, %v889
    %v891 = vand.u32 %v890, 4294901760
    %892 = vmatpush1.msra.mxu0 %v891
    %893 = vmatprep.subr.mxu0 0.0
    %v894 = vsub.f32 %v731, %v731
    %v895 = vand.u32 %v894, 4294901760
    %v896 = vsub.f32 %v894, %v895
    %v897 = vand.u32 %v896, 4294901760
    %898 = vmatpush1.msra.mxu0 %v897
    %899 = vmatprep.subr.mxu0 0.0
    %v900 = vsub.f32 %v730, %v730
    %v901 = vand.u32 %v900, 4294901760
    %v902 = vsub.f32 %v900, %v901
    %v903 = vand.u32 %v902, 4294901760
    %904 = vmatpush1.msra.mxu0 %v903
    %905 = vmatprep.subr.mxu0 0.0
    %v906 = vsub.f32 %v729, %v729
    %v907 = vand.u32 %v906, 4294901760
    %v908 = vsub.f32 %v906, %v907
    %v909 = vand.u32 %v908, 4294901760
    %910 = vmatpush1.msra.mxu0 %v909
    %911 = vmatprep.subr.mxu0 0.0
    %v912 = vsub.f32 %v728, %v728
    %v913 = vand.u32 %v912, 4294901760
    %v914 = vsub.f32 %v912, %v913
    %v915 = vand.u32 %v914, 4294901760
    %916 = vmatpush1.msra.mxu0 %v915
    %917 = vmatprep.subr.mxu0 0.0
    %918 = vmatpush2.msra.mxu0 0.0
    %919 = vmatprep.subr.mxu0 0.0
    %920 = vmatpush2.msra.mxu0 0.0
    %921 = vmatprep.subr.mxu0 0.0
    %922 = vmatpush2.msra.mxu0 0.0
    %923 = vmatprep.subr.mxu0 0.0
    %924 = vmatpush2.msra.mxu0 0.0
    %925 = vmatprep.subr.mxu0 0.0
    %926 = vmatpush2.msra.mxu0 0.0
    %927 = vmatprep.subr.mxu0 0.0
    %928 = vmatpush2.msra.mxu0 0.0
    %929 = vmatprep.subr.mxu0 0.0
    %930 = vmatpush2.msra.mxu0 0.0
    %931 = vmatprep.subr.mxu0 0.0
    %932 = vmatpush2.msra.mxu0 0.0
    %933 = vmatprep.subr.mxu0 0.0
    %934 = vmatpush2.msra.mxu0 0.0
    %935 = vmatprep.subr.mxu0 0.0
    %936 = vmatpush2.msra.mxu0 0.0
    %937 = vmatprep.subr.mxu0 0.0
    %938 = vmatpush2.msra.mxu0 0.0
    %939 = vmatprep.subr.mxu0 0.0
    %940 = vmatpush2.msra.mxu0 0.0
    %941 = vmatprep.subr.mxu0 0.0
    %942 = vmatpush2.msra.mxu0 0.0
    %943 = vmatprep.subr.mxu0 0.0
    %944 = vmatpush2.msra.mxu0 0.0
    %945 = vmatprep.subr.mxu0 0.0
    %946 = vmatpush2.msra.mxu0 0.0
    %947 = vmatprep.subr.mxu0 0.0
    %948 = vmatpush2.msra.mxu0 0.0
    %949 = vmatprep.mubr.f32.mxu0 0.0
    %v950 = vand.u32 %v687, 4294901760
    %951 = vmatmul.mubr.f32.gmra.mxu0 %v950
    %v952 = vpop.f32.mrf.mxu0
    %v953 = vadd.f32 %v818, %v952
    %v954 = vpop.f32.mrf.mxu0
    %955 = vdwg.mxu0
    %956 = vmatprep.subr.mxu0 0.0
    %v957 = vsub.f32 %v743, %v743
    %958 = vmatpush1.msra.mxu0 %v957
    %959 = vmatprep.subr.mxu0 0.0
    %v960 = vsub.f32 %v742, %v742
    %961 = vmatpush1.msra.mxu0 %v960
    %962 = vmatprep.subr.mxu0 0.0
    %v963 = vsub.f32 %v741, %v741
    %964 = vmatpush1.msra.mxu0 %v963
    %965 = vmatprep.subr.mxu0 0.0
    %v966 = vsub.f32 %v740, %v740
    %967 = vmatpush1.msra.mxu0 %v966
    %968 = vmatprep.subr.mxu0 0.0
    %v969 = vsub.f32 %v739, %v739
    %970 = vmatpush1.msra.mxu0 %v969
    %971 = vmatprep.subr.mxu0 0.0
    %v972 = vsub.f32 %v738, %v738
    %973 = vmatpush1.msra.mxu0 %v972
    %974 = vmatprep.subr.mxu0 0.0
    %v975 = vsub.f32 %v737, %v737
    %976 = vmatpush1.msra.mxu0 %v975
    %977 = vmatprep.subr.mxu0 0.0
    %v978 = vsub.f32 %v736, %v736
    %979 = vmatpush1.msra.mxu0 %v978
    %980 = vmatprep.subr.mxu0 0.0
    %v981 = vsub.f32 %v735, %v735
    %982 = vmatpush1.msra.mxu0 %v981
    %983 = vmatprep.subr.mxu0 0.0
    %v984 = vsub.f32 %v734, %v734
    %985 = vmatpush1.msra.mxu0 %v984
    %986 = vmatprep.subr.mxu0 0.0
    %v987 = vsub.f32 %v733, %v733
    %988 = vmatpush1.msra.mxu0 %v987
    %989 = vmatprep.subr.mxu0 0.0
    %v990 = vsub.f32 %v732, %v732
    %991 = vmatpush1.msra.mxu0 %v990
    %992 = vmatprep.subr.mxu0 0.0
    %v993 = vsub.f32 %v731, %v731
    %994 = vmatpush1.msra.mxu0 %v993
    %995 = vmatprep.subr.mxu0 0.0
    %v996 = vsub.f32 %v730, %v730
    %997 = vmatpush1.msra.mxu0 %v996
    %998 = vmatprep.subr.mxu0 0.0
    %v999 = vsub.f32 %v729, %v729
    %1000 = vmatpush1.msra.mxu0 %v999
    %1001 = vmatprep.subr.mxu0 0.0
    %v1002 = vsub.f32 %v728, %v728
    %1003 = vmatpush1.msra.mxu0 %v1002
    %1004 = vmatprep.subr.mxu0 0.0
    %1005 = vmatpush2.msra.mxu0 0.0
    %1006 = vmatprep.subr.mxu0 0.0
    %1007 = vmatpush2.msra.mxu0 0.0
    %1008 = vmatprep.subr.mxu0 0.0
    %1009 = vmatpush2.msra.mxu0 0.0
    %1010 = vmatprep.subr.mxu0 0.0
    %1011 = vmatpush2.msra.mxu0 0.0
    %1012 = vmatprep.subr.mxu0 0.0
    %1013 = vmatpush2.msra.mxu0 0.0
    %1014 = vmatprep.subr.mxu0 0.0
    %1015 = vmatpush2.msra.mxu0 0.0
    %1016 = vmatprep.subr.mxu0 0.0
    %1017 = vmatpush2.msra.mxu0 0.0
    %1018 = vmatprep.subr.mxu0 0.0
    %1019 = vmatpush2.msra.mxu0 0.0
    %1020 = vmatprep.subr.mxu0 0.0
    %1021 = vmatpush2.msra.mxu0 0.0
    %1022 = vmatprep.subr.mxu0 0.0
    %1023 = vmatpush2.msra.mxu0 0.0
    %1024 = vmatprep.subr.mxu0 0.0
    %1025 = vmatpush2.msra.mxu0 0.0
    %1026 = vmatprep.subr.mxu0 0.0
    %1027 = vmatpush2.msra.mxu0 0.0
    %1028 = vmatprep.subr.mxu0 0.0
    %1029 = vmatpush2.msra.mxu0 0.0
    %1030 = vmatprep.subr.mxu0 0.0
    %1031 = vmatpush2.msra.mxu0 0.0
    %1032 = vmatprep.subr.mxu0 0.0
    %1033 = vmatpush2.msra.mxu0 0.0
    %1034 = vmatprep.subr.mxu0 0.0
    %1035 = vmatpush2.msra.mxu0 0.0
    %1036 = vmatprep.mubr.f32.mxu0 0.0
    %v1037 = vand.u32 %v687, 4294901760
    %v1038 = vsub.f32 %v687, %v1037
    %1039 = vmatmul.mubr.f32.gmra.mxu0 %v1038
    %v1040 = vpop.f32.mrf.mxu0
    %v1041 = vadd.f32 %v953, %v1040
    %v1042 = vpop.f32.mrf.mxu0
    %1043 = vdwg.mxu0
    %1044 = vmatprep.subr.mxu0 0.0
    %1045 = vmatpush1.msra.mxu0 %v743
    %1046 = vmatprep.subr.mxu0 0.0
    %1047 = vmatpush1.msra.mxu0 %v742
    %1048 = vmatprep.subr.mxu0 0.0
    %1049 = vmatpush1.msra.mxu0 %v741
    %1050 = vmatprep.subr.mxu0 0.0
    %1051 = vmatpush1.msra.mxu0 %v740
    %1052 = vmatprep.subr.mxu0 0.0
    %1053 = vmatpush1.msra.mxu0 %v739
    %1054 = vmatprep.subr.mxu0 0.0
    %1055 = vmatpush1.msra.mxu0 %v738
    %1056 = vmatprep.subr.mxu0 0.0
    %1057 = vmatpush1.msra.mxu0 %v737
    %1058 = vmatprep.subr.mxu0 0.0
    %1059 = vmatpush1.msra.mxu0 %v736
    %1060 = vmatprep.subr.mxu0 0.0
    %1061 = vmatpush1.msra.mxu0 %v735
    %1062 = vmatprep.subr.mxu0 0.0
    %1063 = vmatpush1.msra.mxu0 %v734
    %1064 = vmatprep.subr.mxu0 0.0
    %1065 = vmatpush1.msra.mxu0 %v733
    %1066 = vmatprep.subr.mxu0 0.0
    %1067 = vmatpush1.msra.mxu0 %v732
    %1068 = vmatprep.subr.mxu0 0.0
    %1069 = vmatpush1.msra.mxu0 %v731
    %1070 = vmatprep.subr.mxu0 0.0
    %1071 = vmatpush1.msra.mxu0 %v730
    %1072 = vmatprep.subr.mxu0 0.0
    %1073 = vmatpush1.msra.mxu0 %v729
    %1074 = vmatprep.subr.mxu0 0.0
    %1075 = vmatpush1.msra.mxu0 %v728
    %1076 = vmatprep.subr.mxu0 0.0
    %1077 = vmatpush2.msra.mxu0 0.0
    %1078 = vmatprep.subr.mxu0 0.0
    %1079 = vmatpush2.msra.mxu0 0.0
    %1080 = vmatprep.subr.mxu0 0.0
    %1081 = vmatpush2.msra.mxu0 0.0
    %1082 = vmatprep.subr.mxu0 0.0
    %1083 = vmatpush2.msra.mxu0 0.0
    %1084 = vmatprep.subr.mxu0 0.0
    %1085 = vmatpush2.msra.mxu0 0.0
    %1086 = vmatprep.subr.mxu0 0.0
    %1087 = vmatpush2.msra.mxu0 0.0
    %1088 = vmatprep.subr.mxu0 0.0
    %1089 = vmatpush2.msra.mxu0 0.0
    %1090 = vmatprep.subr.mxu0 0.0
    %1091 = vmatpush2.msra.mxu0 0.0
    %1092 = vmatprep.subr.mxu0 0.0
    %1093 = vmatpush2.msra.mxu0 0.0
    %1094 = vmatprep.subr.mxu0 0.0
    %1095 = vmatpush2.msra.mxu0 0.0
    %1096 = vmatprep.subr.mxu0 0.0
    %1097 = vmatpush2.msra.mxu0 0.0
    %1098 = vmatprep.subr.mxu0 0.0
    %1099 = vmatpush2.msra.mxu0 0.0
    %1100 = vmatprep.subr.mxu0 0.0
    %1101 = vmatpush2.msra.mxu0 0.0
    %1102 = vmatprep.subr.mxu0 0.0
    %1103 = vmatpush2.msra.mxu0 0.0
    %1104 = vmatprep.subr.mxu0 0.0
    %1105 = vmatpush2.msra.mxu0 0.0
    %1106 = vmatprep.subr.mxu0 0.0
    %1107 = vmatpush2.msra.mxu0 0.0
    %1108 = vmatprep.mubr.f32.mxu0 0.0
    %v1109 = vand.u32 %v687, 4294901760
    %v1110 = vsub.f32 %v687, %v1109
    %v1111 = vand.u32 %v1110, 4294901760
    %1112 = vmatmul.mubr.f32.gmra.mxu0 %v1111
    %v1113 = vpop.f32.mrf.mxu0
    %v1114 = vadd.f32 %v1041, %v1113
    %v1115 = vpop.f32.mrf.mxu0
    %1116 = vdwg.mxu0
    %1117 = vmatprep.subr.mxu0 0.0
    %v1118 = vsub.f32 %v743, %v743
    %v1119 = vand.u32 %v1118, 4294901760
    %1120 = vmatpush1.msra.mxu0 %v1119
    %1121 = vmatprep.subr.mxu0 0.0
    %v1122 = vsub.f32 %v742, %v742
    %v1123 = vand.u32 %v1122, 4294901760
    %1124 = vmatpush1.msra.mxu0 %v1123
    %1125 = vmatprep.subr.mxu0 0.0
    %v1126 = vsub.f32 %v741, %v741
    %v1127 = vand.u32 %v1126, 4294901760
    %1128 = vmatpush1.msra.mxu0 %v1127
    %1129 = vmatprep.subr.mxu0 0.0
    %v1130 = vsub.f32 %v740, %v740
    %v1131 = vand.u32 %v1130, 4294901760
    %1132 = vmatpush1.msra.mxu0 %v1131
    %1133 = vmatprep.subr.mxu0 0.0
    %v1134 = vsub.f32 %v739, %v739
    %v1135 = vand.u32 %v1134, 4294901760
    %1136 = vmatpush1.msra.mxu0 %v1135
    %1137 = vmatprep.subr.mxu0 0.0
    %v1138 = vsub.f32 %v738, %v738
    %v1139 = vand.u32 %v1138, 4294901760
    %1140 = vmatpush1.msra.mxu0 %v1139
    %1141 = vmatprep.subr.mxu0 0.0
    %v1142 = vsub.f32 %v737, %v737
    %v1143 = vand.u32 %v1142, 4294901760
    %1144 = vmatpush1.msra.mxu0 %v1143
    %1145 = vmatprep.subr.mxu0 0.0
    %v1146 = vsub.f32 %v736, %v736
    %v1147 = vand.u32 %v1146, 4294901760
    %1148 = vmatpush1.msra.mxu0 %v1147
    %1149 = vmatprep.subr.mxu0 0.0
    %v1150 = vsub.f32 %v735, %v735
    %v1151 = vand.u32 %v1150, 4294901760
    %1152 = vmatpush1.msra.mxu0 %v1151
    %1153 = vmatprep.subr.mxu0 0.0
    %v1154 = vsub.f32 %v734, %v734
    %v1155 = vand.u32 %v1154, 4294901760
    %1156 = vmatpush1.msra.mxu0 %v1155
    %1157 = vmatprep.subr.mxu0 0.0
    %v1158 = vsub.f32 %v733, %v733
    %v1159 = vand.u32 %v1158, 4294901760
    %1160 = vmatpush1.msra.mxu0 %v1159
    %1161 = vmatprep.subr.mxu0 0.0
    %v1162 = vsub.f32 %v732, %v732
    %v1163 = vand.u32 %v1162, 4294901760
    %1164 = vmatpush1.msra.mxu0 %v1163
    %1165 = vmatprep.subr.mxu0 0.0
    %v1166 = vsub.f32 %v731, %v731
    %v1167 = vand.u32 %v1166, 4294901760
    %1168 = vmatpush1.msra.mxu0 %v1167
    %1169 = vmatprep.subr.mxu0 0.0
    %v1170 = vsub.f32 %v730, %v730
    %v1171 = vand.u32 %v1170, 4294901760
    %1172 = vmatpush1.msra.mxu0 %v1171
    %1173 = vmatprep.subr.mxu0 0.0
    %v1174 = vsub.f32 %v729, %v729
    %v1175 = vand.u32 %v1174, 4294901760
    %1176 = vmatpush1.msra.mxu0 %v1175
    %1177 = vmatprep.subr.mxu0 0.0
    %v1178 = vsub.f32 %v728, %v728
    %v1179 = vand.u32 %v1178, 4294901760
    %1180 = vmatpush1.msra.mxu0 %v1179
    %1181 = vmatprep.subr.mxu0 0.0
    %1182 = vmatpush2.msra.mxu0 0.0
    %1183 = vmatprep.subr.mxu0 0.0
    %1184 = vmatpush2.msra.mxu0 0.0
    %1185 = vmatprep.subr.mxu0 0.0
    %1186 = vmatpush2.msra.mxu0 0.0
    %1187 = vmatprep.subr.mxu0 0.0
    %1188 = vmatpush2.msra.mxu0 0.0
    %1189 = vmatprep.subr.mxu0 0.0
    %1190 = vmatpush2.msra.mxu0 0.0
    %1191 = vmatprep.subr.mxu0 0.0
    %1192 = vmatpush2.msra.mxu0 0.0
    %1193 = vmatprep.subr.mxu0 0.0
    %1194 = vmatpush2.msra.mxu0 0.0
    %1195 = vmatprep.subr.mxu0 0.0
    %1196 = vmatpush2.msra.mxu0 0.0
    %1197 = vmatprep.subr.mxu0 0.0
    %1198 = vmatpush2.msra.mxu0 0.0
    %1199 = vmatprep.subr.mxu0 0.0
    %1200 = vmatpush2.msra.mxu0 0.0
    %1201 = vmatprep.subr.mxu0 0.0
    %1202 = vmatpush2.msra.mxu0 0.0
    %1203 = vmatprep.subr.mxu0 0.0
    %1204 = vmatpush2.msra.mxu0 0.0
    %1205 = vmatprep.subr.mxu0 0.0
    %1206 = vmatpush2.msra.mxu0 0.0
    %1207 = vmatprep.subr.mxu0 0.0
    %1208 = vmatpush2.msra.mxu0 0.0
    %1209 = vmatprep.subr.mxu0 0.0
    %1210 = vmatpush2.msra.mxu0 0.0
    %1211 = vmatprep.subr.mxu0 0.0
    %1212 = vmatpush2.msra.mxu0 0.0
    %1213 = vmatprep.mubr.f32.mxu0 0.0
    %v1214 = vand.u32 %v687, 4294901760
    %1215 = vmatmul.mubr.f32.gmra.mxu0 %v1214
    %v1216 = vpop.f32.mrf.mxu0
    %v1217 = vadd.f32 %v1114, %v1216
    %v1218 = vpop.f32.mrf.mxu0
    %1219 = vdwg.mxu0
    %1220 = vmatprep.subr.mxu0 0.0
    %1221 = vmatpush1.msra.mxu0 %v743
    %1222 = vmatprep.subr.mxu0 0.0
    %1223 = vmatpush1.msra.mxu0 %v742
    %1224 = vmatprep.subr.mxu0 0.0
    %1225 = vmatpush1.msra.mxu0 %v741
    %1226 = vmatprep.subr.mxu0 0.0
    %1227 = vmatpush1.msra.mxu0 %v740
    %1228 = vmatprep.subr.mxu0 0.0
    %1229 = vmatpush1.msra.mxu0 %v739
    %1230 = vmatprep.subr.mxu0 0.0
    %1231 = vmatpush1.msra.mxu0 %v738
    %1232 = vmatprep.subr.mxu0 0.0
    %1233 = vmatpush1.msra.mxu0 %v737
    %1234 = vmatprep.subr.mxu0 0.0
    %1235 = vmatpush1.msra.mxu0 %v736
    %1236 = vmatprep.subr.mxu0 0.0
    %1237 = vmatpush1.msra.mxu0 %v735
    %1238 = vmatprep.subr.mxu0 0.0
    %1239 = vmatpush1.msra.mxu0 %v734
    %1240 = vmatprep.subr.mxu0 0.0
    %1241 = vmatpush1.msra.mxu0 %v733
    %1242 = vmatprep.subr.mxu0 0.0
    %1243 = vmatpush1.msra.mxu0 %v732
    %1244 = vmatprep.subr.mxu0 0.0
    %1245 = vmatpush1.msra.mxu0 %v731
    %1246 = vmatprep.subr.mxu0 0.0
    %1247 = vmatpush1.msra.mxu0 %v730
    %1248 = vmatprep.subr.mxu0 0.0
    %1249 = vmatpush1.msra.mxu0 %v729
    %1250 = vmatprep.subr.mxu0 0.0
    %1251 = vmatpush1.msra.mxu0 %v728
    %1252 = vmatprep.subr.mxu0 0.0
    %1253 = vmatpush2.msra.mxu0 0.0
    %1254 = vmatprep.subr.mxu0 0.0
    %1255 = vmatpush2.msra.mxu0 0.0
    %1256 = vmatprep.subr.mxu0 0.0
    %1257 = vmatpush2.msra.mxu0 0.0
    %1258 = vmatprep.subr.mxu0 0.0
    %1259 = vmatpush2.msra.mxu0 0.0
    %1260 = vmatprep.subr.mxu0 0.0
    %1261 = vmatpush2.msra.mxu0 0.0
    %1262 = vmatprep.subr.mxu0 0.0
    %1263 = vmatpush2.msra.mxu0 0.0
    %1264 = vmatprep.subr.mxu0 0.0
    %1265 = vmatpush2.msra.mxu0 0.0
    %1266 = vmatprep.subr.mxu0 0.0
    %1267 = vmatpush2.msra.mxu0 0.0
    %1268 = vmatprep.subr.mxu0 0.0
    %1269 = vmatpush2.msra.mxu0 0.0
    %1270 = vmatprep.subr.mxu0 0.0
    %1271 = vmatpush2.msra.mxu0 0.0
    %1272 = vmatprep.subr.mxu0 0.0
    %1273 = vmatpush2.msra.mxu0 0.0
    %1274 = vmatprep.subr.mxu0 0.0
    %1275 = vmatpush2.msra.mxu0 0.0
    %1276 = vmatprep.subr.mxu0 0.0
    %1277 = vmatpush2.msra.mxu0 0.0
    %1278 = vmatprep.subr.mxu0 0.0
    %1279 = vmatpush2.msra.mxu0 0.0
    %1280 = vmatprep.subr.mxu0 0.0
    %1281 = vmatpush2.msra.mxu0 0.0
    %1282 = vmatprep.subr.mxu0 0.0
    %1283 = vmatpush2.msra.mxu0 0.0
    %1284 = vmatprep.mubr.f32.mxu0 0.0
    %v1285 = vand.u32 %v687, 4294901760
    %1286 = vmatmul.mubr.f32.gmra.mxu0 %v1285
    %v1287 = vpop.f32.mrf.mxu0
    %v1288 = vadd.f32 %v1217, %v1287
    %v1289 = vpop.f32.mrf.mxu0
    %1290 = vdwg.mxu0
    %1291 = vst [vmem:[%s4] sm:$0xff] %v1288
    // Predicated region
    $region22: #{gaussian_cv_minibatch.1} parent=1 // pred_check
      _
    $region23: #{gaussian_cv_minibatch.1} parent=1 // pred_check_branch
      %1293 = sbr.rel (0) target = $region25
    $region24: #{gaussian_cv_minibatch.1} parent=1 // pred_region
      _
    $region25: #{gaussian_cv_minibatch.1} parent=1 // pred_fallthru
      _
    // Predicated region
    $region26: #{gaussian_cv_minibatch.1} parent=1 // pred_check
      _
    $region27: #{gaussian_cv_minibatch.1} parent=1 // pred_check_branch
      %1295 = sbr.rel (0) target = $region29
    $region28: #{gaussian_cv_minibatch.1} parent=1 // pred_region
      _
    $region29: #{gaussian_cv_minibatch.1} parent=1 // pred_fallthru
      _
    %1296 = vsyncpa [#allocation4], 1

</llo_original>
